<compile_context>
chip_gen: v5e
topology: v5e:2x2
jax: 0.10.0
libtpu: 0.0.40
codegen_flags: <defaults>
</compile_context>

<pallas_src>
import functools

import jax
import jax.numpy as jnp
from jax.experimental import pallas as pl
from jax.experimental.pallas import tpu as pltpu


def _ce_label_smooth_kernel(logits_ref, targets_ref, out_ref, *,
                            epsilon, num_classes, n_rows, tile_n, reduce_tile):
    # logits_ref : (tile_n, C) input dtype (bf16 stays bf16 through the DMA)
    # targets_ref: (tile_n, 1) int32
    # out_ref    : (1, 8, 128) f32 partial sum   if reduce_tile (size_average)
    #              (tile_n, 128) f32 per-row     otherwise
    i = pl.program_id(0)

    x = logits_ref[...].astype(jnp.float32)           # per-tile upcast only
    tn, c = x.shape
    tgt = targets_ref[...]                             # (tn, 1) int32

    # Numerically stable logZ (no class masking needed: block spans full C).
    m = jnp.max(x, axis=1, keepdims=True)              # (tn, 1)
    e = jnp.exp(x - m)
    log_z = m + jnp.log(jnp.sum(e, axis=1, keepdims=True))

    # Row sums / target gather computed directly from x (not from x - m).
    sum_x = jnp.sum(x, axis=1, keepdims=True)
    class_ids = jax.lax.broadcasted_iota(jnp.int32, (tn, c), 1)
    x_tgt = jnp.sum(jnp.where(class_ids == tgt, x, 0.0), axis=1, keepdims=True)

    # loss_n = logZ - (1-eps)*x[n,t] - (eps/C)*sum_c x[n,c]
    row_loss = (log_z
                - (1.0 - epsilon) * x_tgt
                - (epsilon / num_classes) * sum_x)      # (tn, 1) f32

    # Zero rows beyond the true batch size (partial edge block reads garbage;
    # where() also neutralizes any NaN/inf those rows might produce).
    row_ids = i * tile_n + jax.lax.broadcasted_iota(jnp.int32, (tn, 1), 0)
    row_loss = jnp.where(row_ids < n_rows, row_loss, 0.0)

    if reduce_tile:
        tile_sum = jnp.sum(row_loss, axis=0, keepdims=True)        # (1, 1)
        out_ref[...] = jnp.broadcast_to(tile_sum.reshape(1, 1, 1),
                                        out_ref.shape)
    else:
        out_ref[...] = jnp.broadcast_to(row_loss, out_ref.shape)   # lane-dense


def _vmem_capacity_bytes():
    try:
        return int(pltpu.get_tpu_info().vmem_capacity_bytes)
    except Exception:
        return 64 * 1024 * 1024       # conservative (v7x per-TC physical)


def cross_entropy_label_smooth(logits, targets, *, num_classes, epsilon=0.1,
                               size_average=True, tile_n=None):
    """logits: (N, C) float, targets: (N,) integer class indices."""
    n, c = logits.shape
    assert c == num_classes
    itemsize = jnp.dtype(logits.dtype).itemsize

    # ---- tile selection (accounts for in-kernel f32/i32 temporaries) ----
    # Per grid step footprint ~ 2x double-buffered input tile
    #                           + ~4 full-tile f32/i32 compiler temporaries.
    cap = _vmem_capacity_bytes()
    per_row_bytes = c * (2 * itemsize + 4 * 4)
    target_footprint = min(cap // 2, 48 * 1024 * 1024)
    # TODO(synk): C-chunked online-logsumexp path for very large C.
    assert per_row_bytes * 8 <= (cap * 9) // 10, (
        "num_classes too large for a single-pass tile; needs a C-chunked path")

    if tile_n is None:
        t = target_footprint // per_row_bytes
        tile_n = int(min(2048, max(8, (t // 8) * 8)))
    tile_n = max(8, (int(tile_n) // 8) * 8)
    if n >= 8:
        tile_n = min(tile_n, (n // 8) * 8)
    else:
        tile_n = n                                  # full-dim block, still legal
    num_tiles = (n + tile_n - 1) // tile_n

    footprint = per_row_bytes * tile_n + (2 << 20)
    vmem_limit = int(min((cap * 9) // 10, max(32 << 20, footprint + (8 << 20))))

    targets_col = targets.astype(jnp.int32).reshape(n, 1)   # cheap reshape only

    kernel = functools.partial(
        _ce_label_smooth_kernel,
        epsilon=float(epsilon), num_classes=int(c),
        n_rows=int(n), tile_n=int(tile_n), reduce_tile=bool(size_average))

    if size_average:
        out_shape = jax.ShapeDtypeStruct((num_tiles, 8, 128), jnp.float32)
        out_specs = pl.BlockSpec((1, 8, 128), lambda i: (i, 0, 0))
        out_bytes = num_tiles * 8 * 128 * 4
    else:
        out_shape = jax.ShapeDtypeStruct((n, 128), jnp.float32)
        out_specs = pl.BlockSpec((tile_n, 128), lambda i: (i, 0))
        out_bytes = n * 128 * 4

    cost = pl.CostEstimate(
        flops=6 * n * c,
        transcendentals=n * c + n,
        bytes_accessed=n * c * itemsize + n * 4 + out_bytes)

    out = pl.pallas_call(
        kernel,
        out_shape=out_shape,
        grid=(num_tiles,),
        in_specs=[
            pl.BlockSpec((tile_n, c), lambda i: (i, 0)),   # logits tile (full C)
            pl.BlockSpec((tile_n, 1), lambda i: (i, 0)),   # targets column
        ],
        out_specs=out_specs,
        compiler_params=pltpu.CompilerParams(
            dimension_semantics=("parallel",),
            vmem_limit_bytes=vmem_limit),
        cost_estimate=cost,
    )(logits, targets_col)

    if size_average:
        return jnp.sum(out[:, 0, 0]) / n     # == (-smooth*logp).mean(0).sum()
    return out[:n, 0]                         # == (-smooth*logp).sum(1)


def _reference(logits, targets, num_classes, epsilon=0.1, size_average=True):
    logp = jax.nn.log_softmax(logits.astype(jnp.float32), axis=1)
    oh = jax.nn.one_hot(targets, num_classes, dtype=jnp.float32)
    smooth = (1.0 - epsilon) * oh + epsilon / num_classes
    if size_average:
        return jnp.sum(jnp.mean(-smooth * logp, axis=0))
    return jnp.sum(-smooth * logp, axis=1)


if __name__ == "__main__":
    key = jax.random.PRNGKey(0)

    # --- case 1: small f32, single tile, both reduction modes ---
    N, C = 8, 16
    k1, k2, key = (*jax.random.split(key, 2), key)
    logits = jax.random.normal(k1, (N, C), dtype=jnp.float32)
    targets = jax.random.randint(k2, (N,), 0, C, dtype=jnp.int32)

    loss = jax.block_until_ready(cross_entropy_label_smooth(
        logits, targets, num_classes=C, epsilon=0.1, size_average=True))
    ref = _reference(logits, targets, C, 0.1, True)
    assert jnp.allclose(loss, ref, atol=1e-5, rtol=1e-5), (loss, ref)

    loss_vec = jax.block_until_ready(cross_entropy_label_smooth(
        logits, targets, num_classes=C, epsilon=0.1, size_average=False))
    ref_vec = _reference(logits, targets, C, 0.1, False)
    assert jnp.allclose(loss_vec, ref_vec, atol=1e-5, rtol=1e-5), (loss_vec, ref_vec)

    # --- case 2: ragged multi-tile (N=37, forced tile_n=8 -> 5 tiles, masked) ---
    N2, C2 = 37, 16
    k3, k4 = jax.random.split(key)
    logits2 = jax.random.normal(k3, (N2, C2), dtype=jnp.float32)
    targets2 = jax.random.randint(k4, (N2,), 0, C2, dtype=jnp.int32)

    loss2 = jax.block_until_ready(cross_entropy_label_smooth(
        logits2, targets2, num_classes=C2, epsilon=0.1,
        size_average=True, tile_n=8))
    ref2 = _reference(logits2, targets2, C2, 0.1, True)
    assert jnp.allclose(loss2, ref2, atol=1e-5, rtol=1e-5), (loss2, ref2)

    loss2_vec = jax.block_until_ready(cross_entropy_label_smooth(
        logits2, targets2, num_classes=C2, epsilon=0.1,
        size_average=False, tile_n=8))
    ref2_vec = _reference(logits2, targets2, C2, 0.1, False)
    assert jnp.allclose(loss2_vec, ref2_vec, atol=1e-5, rtol=1e-5)

    # --- case 3: bf16 streaming, C not a multiple of 128 ---
    N3, C3 = 24, 40
    k5, k6 = jax.random.split(k3)
    logits3 = jax.random.normal(k5, (N3, C3), dtype=jnp.float32).astype(jnp.bfloat16)
    targets3 = jax.random.randint(k6, (N3,), 0, C3, dtype=jnp.int32)

    loss3 = jax.block_until_ready(cross_entropy_label_smooth(
        logits3, targets3, num_classes=C3, epsilon=0.1, size_average=True))
    ref3 = _reference(logits3, targets3, C3, 0.1, True)
    assert jnp.allclose(loss3, ref3, atol=1e-4, rtol=1e-4), (loss3, ref3)

    print("KERNEL_OK")
</pallas_src>

<mosaic_0001>
module attributes {stable_mosaic.version = 11 : i64} {
  func.func @_ce_label_smooth_kernel(%arg0: i32, %arg1: memref<8x16xf32, #tpu.memory_space<vmem>>, %arg2: memref<8x1xi32, #tpu.memory_space<vmem>>, %arg3: memref<1x8x128xf32, #tpu.memory_space<vmem>>) attributes {dimension_semantics = [#tpu.dimension_semantics<parallel>], iteration_bounds = array<i64: 1>, scalar_prefetch = 0 : i64, scratch_operands = 0 : i64, tpu.core_type = #tpu.core_type<tc>, window_params = [{transform_indices = @transform_0, window_bounds = array<i64: 8, 16>}, {transform_indices = @transform_1, window_bounds = array<i64: 8, 1>}, {transform_indices = @transform_2, window_bounds = array<i64: 1, 8, 128>}]} {
    %c0 = arith.constant 0 : index
    %c0_0 = arith.constant 0 : index
    %0 = vector.load %arg1[%c0, %c0_0] : memref<8x16xf32, #tpu.memory_space<vmem>>, vector<8x16xf32>
    %c0_1 = arith.constant 0 : index
    %c0_2 = arith.constant 0 : index
    %1 = vector.load %arg2[%c0_1, %c0_2] : memref<8x1xi32, #tpu.memory_space<vmem>>, vector<8x1xi32>
    %cst = arith.constant dense<0xFF800000> : vector<8xf32>
    %2 = vector.multi_reduction <maximumf>, %0, %cst [1] : vector<8x16xf32> to vector<8xf32>
    %3 = vector.shape_cast %2 : vector<8xf32> to vector<8x1xf32>
    %4 = vector.broadcast %3 : vector<8x1xf32> to vector<8x16xf32>
    %5 = arith.subf %0, %4 : vector<8x16xf32>
    %6 = math.exp %5 : vector<8x16xf32>
    %cst_3 = arith.constant dense<0.000000e+00> : vector<8xf32>
    %7 = vector.multi_reduction <add>, %6, %cst_3 [1] : vector<8x16xf32> to vector<8xf32>
    %8 = vector.shape_cast %7 : vector<8xf32> to vector<8x1xf32>
    %9 = math.log %8 : vector<8x1xf32>
    %10 = arith.addf %3, %9 : vector<8x1xf32>
    %cst_4 = arith.constant dense<0.000000e+00> : vector<8xf32>
    %11 = vector.multi_reduction <add>, %0, %cst_4 [1] : vector<8x16xf32> to vector<8xf32>
    %12 = vector.shape_cast %11 : vector<8xf32> to vector<8x1xf32>
    %13 = tpu.iota {dimensions = array<i32: 1>} : vector<8x16xi32>
    %14 = vector.broadcast %1 : vector<8x1xi32> to vector<8x16xi32>
    %15 = arith.cmpi eq, %13, %14 : vector<8x16xi32>
    %cst_5 = arith.constant 0.000000e+00 : f32
    %16 = vector.broadcast %cst_5 : f32 to vector<8x16xf32>
    %17 = arith.select %15, %0, %16 : vector<8x16xi1>, vector<8x16xf32>
    %cst_6 = arith.constant dense<0.000000e+00> : vector<8xf32>
    %18 = vector.multi_reduction <add>, %17, %cst_6 [1] : vector<8x16xf32> to vector<8xf32>
    %19 = vector.shape_cast %18 : vector<8xf32> to vector<8x1xf32>
    %cst_7 = arith.constant 0.899999976 : f32
    %20 = vector.broadcast %cst_7 : f32 to vector<8x1xf32>
    %21 = arith.mulf %20, %19 : vector<8x1xf32>
    %22 = arith.subf %10, %21 : vector<8x1xf32>
    %cst_8 = arith.constant 6.250000e-03 : f32
    %23 = vector.broadcast %cst_8 : f32 to vector<8x1xf32>
    %24 = arith.mulf %23, %12 : vector<8x1xf32>
    %25 = arith.subf %22, %24 : vector<8x1xf32>
    %c8_i32 = arith.constant 8 : i32
    %26 = arith.muli %arg0, %c8_i32 : i32
    %27 = tpu.iota {dimensions = array<i32: 0>} : vector<8x1xi32>
    %28 = vector.broadcast %26 : i32 to vector<8x1xi32>
    %29 = arith.addi %28, %27 : vector<8x1xi32>
    %c8_i32_9 = arith.constant 8 : i32
    %30 = vector.broadcast %c8_i32_9 : i32 to vector<8x1xi32>
    %31 = arith.cmpi slt, %29, %30 : vector<8x1xi32>
    %cst_10 = arith.constant 0.000000e+00 : f32
    %32 = vector.broadcast %cst_10 : f32 to vector<8x1xf32>
    %33 = arith.select %31, %25, %32 : vector<8x1xi1>, vector<8x1xf32>
    %cst_11 = arith.constant dense<0.000000e+00> : vector<1xf32>
    %34 = vector.multi_reduction <add>, %33, %cst_11 [0] : vector<8x1xf32> to vector<1xf32>
    %35 = vector.shape_cast %34 : vector<1xf32> to vector<1x1xf32>
    %36 = vector.shape_cast %35 : vector<1x1xf32> to vector<1x1x1xf32>
    %37 = vector.shape_cast %36 : vector<1x1x1xf32> to vector<1x1x1xf32>
    %38 = vector.broadcast %37 : vector<1x1x1xf32> to vector<1x8x128xf32>
    %c0_12 = arith.constant 0 : index
    %c0_13 = arith.constant 0 : index
    %c0_14 = arith.constant 0 : index
    %39 = vector.load %arg3[%c0_12, %c0_13, %c0_14] : memref<1x8x128xf32, #tpu.memory_space<vmem>>, vector<1x8x128xf32>
    tpu.vector_store %arg3[%c0_12, %c0_13, %c0_14], %38 {strides = array<i32>} : memref<1x8x128xf32, #tpu.memory_space<vmem>>, vector<1x8x128xf32>,
    return
  }
  func.func @transform_0(%arg0: i32) -> (i32, i32) {
    %c0_i32 = arith.constant 0 : i32
    %c0_i32_0 = arith.constant 0 : i32
    return %arg0, %c0_i32 : i32, i32
  }
  func.func @transform_1(%arg0: i32) -> (i32, i32) {
    %c0_i32 = arith.constant 0 : i32
    %c0_i32_0 = arith.constant 0 : i32
    return %arg0, %c0_i32 : i32, i32
  }
  func.func @transform_2(%arg0: i32) -> (i32, i32, i32) {
    %c0_i32 = arith.constant 0 : i32
    %c0_i32_0 = arith.constant 0 : i32
    %c0_i32_1 = arith.constant 0 : i32
    return %arg0, %c0_i32, %c0_i32_0 : i32, i32, i32
  }
}

</mosaic_0001>

<llo_original>
// kernel: tpu_custom_call.1
$region0: #{tpu_custom_call.1}
  #allocation0 [shape = 'u32[]', space=smem, size = 0x4, offset = 0x4, fixed_abs, tag = 'smem constant byte address 0x4 - core index']
  #allocation1 [shape = 'u32[72,128]{1,0:T(1,128)}', space=vmem, size = 0x9000, scoped, tag = 'internal scratch']
  %s0 = inlined_call_operand.vmem [shape: f32[8,16], index: 0, kind: input, shape index: {}]
  %s1 = inlined_call_operand.vmem [shape: s32[8,1], index: 1, kind: input, shape index: {}]
  %s2 = inlined_call_operand.hbm [shape: f32[1,8,128], index: 2, kind: output, shape index: {}]
  %s3 = sld [smem:[#allocation0]]
  $region18: #{tpu_custom_call.1} parent=0
    _
  %s5 = ssub.s32 1, %s3
  %s6 = scalar_select 0, %s5, %s3
  $region1: #{tpu_custom_call.1} parent=0
    #allocation2 [shape = 'u8[4096]{0}', space=vmem, size = 0x1000, scoped, tag = 'output window, operand 0, single buffered']
    #allocation3 [shape = 's32[1]{0}', space=sflag, size = 0x4, scoped, tag = 'scoped memory for tpu_custom_call.1']
    %7 = vsyncpa [#allocation3], 0
    // Predicated region
    $region2: #{tpu_custom_call.1} parent=1 // pred_check
      _
    $region3: #{tpu_custom_call.1} parent=1 // pred_check_branch
      %9 = sbr.rel (0) target = $region5
    $region4: #{tpu_custom_call.1} parent=1 // pred_region
      _
    $region5: #{tpu_custom_call.1} parent=1 // pred_fallthru
      _
    // Predicated region
    $region6: #{tpu_custom_call.1} parent=1 // pred_check
      _
    $region7: #{tpu_custom_call.1} parent=1 // pred_check_branch
      %11 = sbr.rel (0) target = $region9
    $region8: #{tpu_custom_call.1} parent=1 // pred_region
      _
    $region9: #{tpu_custom_call.1} parent=1 // pred_fallthru
      _
    %v12 = vld [vmem:[%s0] sm:$0xff]
    %v13 = vld [vmem:[%s1] sm:$0xff]
    %vm14 = vcmask 130048
    %v15 = vsel %vm14, %v12, -inf
    %16 = vmax.xlane.f32.xlu0 %v15
    %v17 = vpop.xlane.xlu0 %16
    %v18 = vsub.f32 %v12, %v17
    %v19 = vmul.f32 %v18, 1.442695
    %v20 = vpow.pop %v19
    %v21 = vsel %vm14, %v20, 0.0
    %22 = vadd.xlane.f32.xlu0 %v21
    %v23 = vpop.xlane.xlu0 %22
    %v24 = vlog2.pop %v23
    %v25 = vmul.f32 %v24, 0.6931472
    %v26 = vadd.f32 %v17, %v25
    %v27 = vsel %vm14, %v12, 0.0
    %28 = vadd.xlane.f32.xlu0 %v27
    %v29 = vpop.xlane.xlu0 %28
    %v30 = vlaneseq
    %v31 = vand.u32 %v30, 127
    %32 = vset.pattern.permute.xlu0 0
    %33 = vperm.xlu0 %32, %v13
    %v34 = vpop.permute.xlu0 %33
    %vm35 = vcmp.eq.s32.totalorder %v31, %v34
    %v36 = vsel %vm35, %v12, 0.0
    %v37 = vsel %vm14, %v36, 0.0
    %38 = vadd.xlane.f32.xlu0 %v37
    %v39 = vpop.xlane.xlu0 %38
    %v40 = vmul.f32 %v39, 0.9
    %v41 = vsub.f32 %v26, %v40
    %v42 = vmul.f32 %v29, 0.00625
    %v43 = vsub.f32 %v41, %v42
    %s44 = smul.u32 0, 8
    %v45 = vlaneseq
    %v46 = vshrl.u32 %v45, 7
    %v47 = vstv %s44
    %v48 = vadd.s32 %v47, %v46
    %vm49 = vcmp.lt.s32.totalorder %v48, 8
    %v50 = vsel %vm49, %v43, 0.0
    %v51 = vrot.slane %v50, 4
    %v52 = vadd.f32 %v50, %v51
    %v53 = vrot.slane %v52, 2
    %v54 = vadd.f32 %v52, %v53
    %v55 = vrot.slane %v54, 1
    %v56 = vadd.f32 %v54, %v55
    %57 = vst [vmem:[#allocation2] sm:$0xff] %v56
    // Predicated region
    $region10: #{tpu_custom_call.1} parent=1 // pred_check
      _
    $region11: #{tpu_custom_call.1} parent=1 // pred_check_branch
      %59 = sbr.rel (0) target = $region13
    $region12: #{tpu_custom_call.1} parent=1 // pred_region
      %61 = vsyncadd [#allocation3], 0
      %s63 = sshll.u32 [#allocation2], 4
      %s64 = int_to_ptr.vmem [resolvable:$true] %s63
      %s65 = sshll.u32 %s2, 4
      %s66 = int_to_ptr.hbm [resolvable:$true] %s65
      %68 = dma.vmem_to_hbm [thread:$0]  %s64, 128, %s66, [#allocation3]
    $region13: #{tpu_custom_call.1} parent=1 // pred_fallthru
      _
    // Predicated region
    $region14: #{tpu_custom_call.1} parent=1 // pred_check
      _
    $region15: #{tpu_custom_call.1} parent=1 // pred_check_branch
      %70 = sbr.rel (0) target = $region17
    $region16: #{tpu_custom_call.1} parent=1 // pred_region
      %72 = dma.done [#allocation3], 128
    $region17: #{tpu_custom_call.1} parent=1 // pred_fallthru
      _
    %73 = vsyncpa [#allocation3], 1

</llo_original>
